<compile_context>
chip_gen: v7x
topology: tpu7x:2x2x1
jax: 0.10.0
libtpu: 0.0.40
codegen_flags: <defaults>
</compile_context>

<pallas_src>
import jax
import jax.numpy as jnp
from jax.experimental import pallas as pl
from jax.experimental.pallas import tpu as pltpu


TILE_B = 2048       # default batch tile (amortizes per-grid-step overhead)
_MIN_SPLIT = 1024   # above this padded batch, keep >= 2 tiles (v7x megacore)


def _round_up(v, m):
    return ((v + m - 1) // m) * m


def qvalue_kernel(x_ref, a_ref, w1x_ref, w1a_ref, b1_ref, w2_ref, b2_ref,
                  w3_ref, b3_ref, o_ref):
    # fc1 with fused concat: [x | a] @ w1 == x @ w1x + a @ w1a  (f32 accumulate)
    h1 = jnp.dot(x_ref[...], w1x_ref[...], preferred_element_type=jnp.float32)
    h1 = h1 + jnp.dot(a_ref[...], w1a_ref[...],
                      preferred_element_type=jnp.float32)
    # bias add / ReLU in f32 (v5e VPU has no bf16 ALUs)
    h1 = jnp.maximum(h1 + b1_ref[...], 0.0)

    # fc2 + ReLU; cast the activation back to the weight dtype so the MXU runs
    # at bf16 rate when weights are bf16 (no-op in f32 mode).
    h2 = jnp.dot(h1.astype(w2_ref.dtype), w2_ref[...],
                 preferred_element_type=jnp.float32)
    h2 = jnp.maximum(h2 + b2_ref[...], 0.0)

    # fc3 (output dim 1) as a plain matmul -> (tile_b, 1) block.  Output is
    # only 4 B/row so the lane-sparse store is negligible; this avoids the
    # XLU lane-reduce + sublane->lane relayout of the previous version.
    q = jnp.dot(h2.astype(w3_ref.dtype), w3_ref[...],
                preferred_element_type=jnp.float32)
    o_ref[...] = q + b3_ref[0, 0]           # b3 read as a scalar from SMEM


def prepare_params(params, input_size, *, use_bf16=True):
    """One-time parameter preprocessing (hoist out of the per-step RL loop)."""
    w1, b1, w2, b2, w3, b3 = params
    wdt = jnp.bfloat16 if use_bf16 else jnp.float32
    w1x = jnp.asarray(w1[:input_size], wdt)      # (input_size, H1)
    w1a = jnp.asarray(w1[input_size:], wdt)      # (output_size, H1)
    b1r = jnp.asarray(b1, jnp.float32).reshape(1, -1)
    w2c = jnp.asarray(w2, wdt)                   # (H1, H2)
    b2r = jnp.asarray(b2, jnp.float32).reshape(1, -1)
    w3c = jnp.asarray(w3, wdt)                   # (H2, 1)
    b3s = jnp.asarray(b3, jnp.float32).reshape(1, 1)
    return (w1x, w1a, b1r, w2c, b2r, w3c, b3s)


def qvalue_net_forward(x, a, params=None, *, tile_b=TILE_B, use_bf16=True,
                       prepared_params=None):
    """x: (B, input_size), a: (B, output_size) -> (B, 1, 1) (matches torch)."""
    B, in_size = x.shape
    out_size = a.shape[1]

    if prepared_params is None:
        prepared_params = prepare_params(params, in_size, use_bf16=use_bf16)
    w1x, w1a, b1r, w2c, b2r, w3c, b3s = prepared_params
    h1_dim = w1x.shape[1]
    h2_dim = w2c.shape[1]

    # Stream activations at the weight precision (bf16 halves HBM traffic).
    act_dt = w1x.dtype
    x = x.astype(act_dt)
    a = a.astype(act_dt)

    # --- batch tiling -------------------------------------------------------
    b8 = _round_up(B, 8)
    tb = min(_round_up(max(tile_b, 8), 8), b8)
    if b8 > _MIN_SPLIT:
        # Keep >= 2 tiles so a 2-TensorCore chip (v7x) can shard the
        # "parallel" batch axis; costs ~0.35 us extra on 1-TC chips.
        tb = min(tb, _round_up(pl.cdiv(b8, 2), 8))
    num_tiles = pl.cdiv(b8, tb)
    b_pad = num_tiles * tb
    if b_pad != B:
        x = jnp.pad(x, ((0, b_pad - B), (0, 0)))
        a = jnp.pad(a, ((0, b_pad - B), (0, 0)))

    # --- cost hint + VMEM budget --------------------------------------------
    isz = x.dtype.itemsize
    wsz = w2c.dtype.itemsize
    x_bytes = b_pad * in_size * isz
    a_bytes = b_pad * out_size * isz
    w_bytes = ((in_size + out_size) * h1_dim + h1_dim * h2_dim + h2_dim) * wsz \
        + (h1_dim + h2_dim + 1) * 4
    o_bytes = b_pad * 4
    cost = pl.CostEstimate(
        flops=2 * b_pad * (in_size * h1_dim + out_size * h1_dim
                           + h1_dim * h2_dim + h2_dim),
        transcendentals=0,
        bytes_accessed=x_bytes + a_bytes + w_bytes + o_bytes)

    # Per-step footprint: double-buffered x/a/out tiles + resident weights +
    # f32 h1/h2 temporaries.  Only raise the scoped-VMEM limit when needed
    # (matters on v5e's 16 MiB default; capped well under v7x's 64 MiB).
    vmem_est = (2 * tb * (in_size + out_size) * isz + 2 * w_bytes
                + 2 * tb * 4 + 4 * tb * max(h1_dim, h2_dim) * 4)
    vmem_limit = None
    if vmem_est > 12 * 1024 * 1024:
        vmem_limit = min(2 * vmem_est, 56 * 1024 * 1024)

    out = pl.pallas_call(
        qvalue_kernel,
        out_shape=jax.ShapeDtypeStruct((b_pad, 1), jnp.float32),
        grid=(num_tiles,),
        in_specs=[
            pl.BlockSpec((tb, in_size), lambda i: (i, 0)),        # x  (streamed)
            pl.BlockSpec((tb, out_size), lambda i: (i, 0)),       # a  (streamed)
            pl.BlockSpec((in_size, h1_dim), lambda i: (0, 0)),    # w1x (resident)
            pl.BlockSpec((out_size, h1_dim), lambda i: (0, 0)),   # w1a (resident)
            pl.BlockSpec((1, h1_dim), lambda i: (0, 0)),          # b1  (resident)
            pl.BlockSpec((h1_dim, h2_dim), lambda i: (0, 0)),     # w2  (resident)
            pl.BlockSpec((1, h2_dim), lambda i: (0, 0)),          # b2  (resident)
            pl.BlockSpec((h2_dim, 1), lambda i: (0, 0)),          # w3  (resident)
            pl.BlockSpec((1, 1), lambda i: (0, 0),
                         memory_space=pltpu.MemorySpace.SMEM),    # b3 scalar
        ],
        out_specs=pl.BlockSpec((tb, 1), lambda i: (i, 0)),
        compiler_params=pltpu.CompilerParams(
            dimension_semantics=("parallel",),
            vmem_limit_bytes=vmem_limit),
        cost_estimate=cost,
    )(x, a, w1x, w1a, b1r, w2c, b2r, w3c, b3s)

    # PyTorch returns (B, 1, 1) because of the .view(B, 1, D) before the fcs.
    return out[:B].reshape(B, 1, 1)


def init_params(key, input_size, output_size, hidden=(128, 128)):
    """PyTorch nn.Linear-style uniform init: U(-1/sqrt(fan_in), 1/sqrt(fan_in))."""
    d_in = input_size + output_size
    k1, k2, k3, k4, k5, k6 = jax.random.split(key, 6)

    def lin(kw, kb, fan_in, fan_out):
        bound = 1.0 / jnp.sqrt(fan_in)
        w = jax.random.uniform(kw, (fan_in, fan_out), jnp.float32, -bound, bound)
        b = jax.random.uniform(kb, (1, fan_out), jnp.float32, -bound, bound)
        return w, b

    w1, b1 = lin(k1, k2, d_in, hidden[0])
    w2, b2 = lin(k3, k4, hidden[0], hidden[1])
    w3, b3 = lin(k5, k6, hidden[1], 1)
    return (w1, b1, w2, b2, w3, b3)


def reference_forward(x, a, params):
    w1, b1, w2, b2, w3, b3 = params
    cat = jnp.concatenate([x, a], axis=-1)
    h1 = jnp.maximum(cat @ w1 + b1, 0.0)
    h2 = jnp.maximum(h1 @ w2 + b2, 0.0)
    return (h2 @ w3 + b3).reshape(x.shape[0], 1, 1)


if __name__ == "__main__":
    input_size = 16
    output_size = 8
    batch = 4

    key = jax.random.PRNGKey(0)
    kx, ka, kp = jax.random.split(key, 3)

    x = jax.random.normal(kx, (batch, input_size), jnp.float32)
    a = jax.random.normal(ka, (batch, output_size), jnp.float32)
    params = init_params(kp, input_size, output_size)
    ref = reference_forward(x, a, params)

    # f32 path: exact comparison against the XLA reference.
    out_f32 = jax.block_until_ready(
        qvalue_net_forward(x, a, params, use_bf16=False))
    assert out_f32.shape == (batch, 1, 1), out_f32.shape
    assert jnp.allclose(out_f32, ref, atol=1e-4, rtol=1e-4), (out_f32, ref)

    # bf16-streamed path (f32 accumulation): loose tolerance.
    out_bf16 = jax.block_until_ready(
        qvalue_net_forward(x, a, params, use_bf16=True))
    assert out_bf16.shape == (batch, 1, 1), out_bf16.shape
    assert jnp.allclose(out_bf16, ref, atol=5e-2, rtol=5e-2), (out_bf16, ref)

    # multi-tile path: exercises grid splitting + batch padding/slicing.
    batch2 = 200
    x2 = jax.random.normal(kx, (batch2, input_size), jnp.float32)
    a2 = jax.random.normal(ka, (batch2, output_size), jnp.float32)
    ref2 = reference_forward(x2, a2, params)
    out2 = jax.block_until_ready(
        qvalue_net_forward(x2, a2, params, use_bf16=False, tile_b=64))
    assert out2.shape == (batch2, 1, 1), out2.shape
    assert jnp.allclose(out2, ref2, atol=1e-4, rtol=1e-4), (out2, ref2)

    print("KERNEL_OK")
</pallas_src>

<mosaic_0001>
module attributes {stable_mosaic.version = 11 : i64} {
  func.func @qvalue_kernel(%arg0: i32, %arg1: memref<8x16xf32, #tpu.memory_space<vmem>>, %arg2: memref<8x8xf32, #tpu.memory_space<vmem>>, %arg3: memref<16x128xf32, #tpu.memory_space<vmem>>, %arg4: memref<8x128xf32, #tpu.memory_space<vmem>>, %arg5: memref<1x128xf32, #tpu.memory_space<vmem>>, %arg6: memref<128x128xf32, #tpu.memory_space<vmem>>, %arg7: memref<1x128xf32, #tpu.memory_space<vmem>>, %arg8: memref<128x1xf32, #tpu.memory_space<vmem>>, %arg9: memref<1x1xf32, #tpu.memory_space<smem>>, %arg10: memref<8x1xf32, #tpu.memory_space<vmem>>) attributes {dimension_semantics = [#tpu.dimension_semantics<parallel>], iteration_bounds = array<i64: 1>, scalar_prefetch = 0 : i64, scratch_operands = 0 : i64, tpu.core_type = #tpu.core_type<tc>, window_params = [{transform_indices = @transform_0, window_bounds = array<i64: 8, 16>}, {transform_indices = @transform_1, window_bounds = array<i64: 8, 8>}, {pipeline_mode = #tpu.pipeline_mode<synchronous>, transform_indices = @transform_2, window_bounds = array<i64: 16, 128>}, {pipeline_mode = #tpu.pipeline_mode<synchronous>, transform_indices = @transform_3, window_bounds = array<i64: 8, 128>}, {pipeline_mode = #tpu.pipeline_mode<synchronous>, transform_indices = @transform_4, window_bounds = array<i64: 1, 128>}, {pipeline_mode = #tpu.pipeline_mode<synchronous>, transform_indices = @transform_5, window_bounds = array<i64: 128, 128>}, {pipeline_mode = #tpu.pipeline_mode<synchronous>, transform_indices = @transform_6, window_bounds = array<i64: 1, 128>}, {pipeline_mode = #tpu.pipeline_mode<synchronous>, transform_indices = @transform_7, window_bounds = array<i64: 128, 1>}, {transform_indices = @transform_8, window_bounds = array<i64: 1, 1>}, {transform_indices = @transform_9, window_bounds = array<i64: 8, 1>}]} {
    %c0 = arith.constant 0 : index
    %c0_0 = arith.constant 0 : index
    %0 = vector.load %arg1[%c0, %c0_0] : memref<8x16xf32, #tpu.memory_space<vmem>>, vector<8x16xf32>
    %c0_1 = arith.constant 0 : index
    %c0_2 = arith.constant 0 : index
    %1 = vector.load %arg3[%c0_1, %c0_2] : memref<16x128xf32, #tpu.memory_space<vmem>>, vector<16x128xf32>
    %cst = arith.constant dense<0.000000e+00> : vector<8x128xf32>
    %2 = tpu.matmul %0, %1, %cst {dimension_numbers = #tpu.dot_dimension_numbers<[1], [0], [0], [1], [0, 0, 1, 1], [], []>} : vector<8x16xf32>, vector<16x128xf32>, vector<8x128xf32> -> vector<8x128xf32>
    %c0_3 = arith.constant 0 : index
    %c0_4 = arith.constant 0 : index
    %3 = vector.load %arg2[%c0_3, %c0_4] : memref<8x8xf32, #tpu.memory_space<vmem>>, vector<8x8xf32>
    %c0_5 = arith.constant 0 : index
    %c0_6 = arith.constant 0 : index
    %4 = vector.load %arg4[%c0_5, %c0_6] : memref<8x128xf32, #tpu.memory_space<vmem>>, vector<8x128xf32>
    %cst_7 = arith.constant dense<0.000000e+00> : vector<8x128xf32>
    %5 = tpu.matmul %3, %4, %cst_7 {dimension_numbers = #tpu.dot_dimension_numbers<[1], [0], [0], [1], [0, 0, 1, 1], [], []>} : vector<8x8xf32>, vector<8x128xf32>, vector<8x128xf32> -> vector<8x128xf32>
    %6 = arith.addf %2, %5 : vector<8x128xf32>
    %c0_8 = arith.constant 0 : index
    %c0_9 = arith.constant 0 : index
    %7 = vector.load %arg5[%c0_8, %c0_9] : memref<1x128xf32, #tpu.memory_space<vmem>>, vector<1x128xf32>
    %8 = vector.broadcast %7 : vector<1x128xf32> to vector<8x128xf32>
    %9 = arith.addf %6, %8 : vector<8x128xf32>
    %cst_10 = arith.constant 0.000000e+00 : f32
    %10 = vector.broadcast %cst_10 : f32 to vector<8x128xf32>
    %11 = arith.maximumf %9, %10 : vector<8x128xf32>
    %c0_11 = arith.constant 0 : index
    %c0_12 = arith.constant 0 : index
    %12 = vector.load %arg6[%c0_11, %c0_12] : memref<128x128xf32, #tpu.memory_space<vmem>>, vector<128x128xf32>
    %cst_13 = arith.constant dense<0.000000e+00> : vector<8x128xf32>
    %13 = tpu.matmul %11, %12, %cst_13 {dimension_numbers = #tpu.dot_dimension_numbers<[1], [0], [0], [1], [0, 0, 1, 1], [], []>} : vector<8x128xf32>, vector<128x128xf32>, vector<8x128xf32> -> vector<8x128xf32>
    %c0_14 = arith.constant 0 : index
    %c0_15 = arith.constant 0 : index
    %14 = vector.load %arg7[%c0_14, %c0_15] : memref<1x128xf32, #tpu.memory_space<vmem>>, vector<1x128xf32>
    %15 = vector.broadcast %14 : vector<1x128xf32> to vector<8x128xf32>
    %16 = arith.addf %13, %15 : vector<8x128xf32>
    %cst_16 = arith.constant 0.000000e+00 : f32
    %17 = vector.broadcast %cst_16 : f32 to vector<8x128xf32>
    %18 = arith.maximumf %16, %17 : vector<8x128xf32>
    %c0_17 = arith.constant 0 : index
    %c0_18 = arith.constant 0 : index
    %19 = vector.load %arg8[%c0_17, %c0_18] : memref<128x1xf32, #tpu.memory_space<vmem>>, vector<128x1xf32>
    %cst_19 = arith.constant dense<0.000000e+00> : vector<8x1xf32>
    %20 = tpu.matmul %18, %19, %cst_19 {dimension_numbers = #tpu.dot_dimension_numbers<[1], [0], [0], [1], [0, 0, 1, 1], [], []>} : vector<8x128xf32>, vector<128x1xf32>, vector<8x1xf32> -> vector<8x1xf32>
    %c0_20 = arith.constant 0 : index
    %c0_21 = arith.constant 0 : index
    %21 = memref.load %arg9[%c0_20, %c0_21] : memref<1x1xf32, #tpu.memory_space<smem>>
    %22 = vector.broadcast %21 : f32 to vector<8x1xf32>
    %23 = arith.addf %20, %22 : vector<8x1xf32>
    %c0_22 = arith.constant 0 : index
    %c0_23 = arith.constant 0 : index
    %24 = vector.load %arg10[%c0_22, %c0_23] : memref<8x1xf32, #tpu.memory_space<vmem>>, vector<8x1xf32>
    tpu.vector_store %arg10[%c0_22, %c0_23], %23 {strides = array<i32>} : memref<8x1xf32, #tpu.memory_space<vmem>>, vector<8x1xf32>,
    return
  }
  func.func @transform_0(%arg0: i32) -> (i32, i32) {
    %c0_i32 = arith.constant 0 : i32
    %c0_i32_0 = arith.constant 0 : i32
    return %arg0, %c0_i32 : i32, i32
  }
  func.func @transform_1(%arg0: i32) -> (i32, i32) {
    %c0_i32 = arith.constant 0 : i32
    %c0_i32_0 = arith.constant 0 : i32
    return %arg0, %c0_i32 : i32, i32
  }
  func.func @transform_2(%arg0: i32) -> (i32, i32) {
    %c0_i32 = arith.constant 0 : i32
    %c0_i32_0 = arith.constant 0 : i32
    %c0_i32_1 = arith.constant 0 : i32
    return %c0_i32, %c0_i32_0 : i32, i32
  }
  func.func @transform_3(%arg0: i32) -> (i32, i32) {
    %c0_i32 = arith.constant 0 : i32
    %c0_i32_0 = arith.constant 0 : i32
    %c0_i32_1 = arith.constant 0 : i32
    return %c0_i32, %c0_i32_0 : i32, i32
  }
  func.func @transform_4(%arg0: i32) -> (i32, i32) {
    %c0_i32 = arith.constant 0 : i32
    %c0_i32_0 = arith.constant 0 : i32
    %c0_i32_1 = arith.constant 0 : i32
    return %c0_i32, %c0_i32_0 : i32, i32
  }
  func.func @transform_5(%arg0: i32) -> (i32, i32) {
    %c0_i32 = arith.constant 0 : i32
    %c0_i32_0 = arith.constant 0 : i32
    %c0_i32_1 = arith.constant 0 : i32
    return %c0_i32, %c0_i32_0 : i32, i32
  }
  func.func @transform_6(%arg0: i32) -> (i32, i32) {
    %c0_i32 = arith.constant 0 : i32
    %c0_i32_0 = arith.constant 0 : i32
    %c0_i32_1 = arith.constant 0 : i32
    return %c0_i32, %c0_i32_0 : i32, i32
  }
  func.func @transform_7(%arg0: i32) -> (i32, i32) {
    %c0_i32 = arith.constant 0 : i32
    %c0_i32_0 = arith.constant 0 : i32
    %c0_i32_1 = arith.constant 0 : i32
    return %c0_i32, %c0_i32_0 : i32, i32
  }
  func.func @transform_8(%arg0: i32) -> (i32, i32) {
    %c0_i32 = arith.constant 0 : i32
    %c0_i32_0 = arith.constant 0 : i32
    %c0_i32_1 = arith.constant 0 : i32
    return %c0_i32, %c0_i32_0 : i32, i32
  }
  func.func @transform_9(%arg0: i32) -> (i32, i32) {
    %c0_i32 = arith.constant 0 : i32
    %c0_i32_0 = arith.constant 0 : i32
    return %arg0, %c0_i32 : i32, i32
  }
}

</mosaic_0001>

<llo_original>
// kernel: tpu_custom_call.1
$region0: #{tpu_custom_call.1}
  #allocation0 [shape = 'u32[]', space=smem, size = 0x4, offset = 0x4, fixed_abs, tag = 'smem constant byte address 0x4 - core index']
  #allocation1 [shape = 'u32[144,128]{1,0:T(1,128)}', space=vmem, size = 0x12000, scoped, tag = 'internal scratch']
  #allocation2 [shape = 'f32[1,1]{1,0:T(1,128)S(6)}', space=smem, size = 0x200, scoped, tag = 'scoped memory for tpu_custom_call.1']
  %s0 = inlined_call_operand.hbm [shape: f32[8,16], index: 0, kind: input, shape index: {}]
  %s1 = inlined_call_operand.hbm [shape: f32[8,8], index: 1, kind: input, shape index: {}]
  %s2 = inlined_call_operand.vmem [shape: f32[16,128], index: 2, kind: input, shape index: {}]
  %s3 = inlined_call_operand.hbm [shape: f32[8,128], index: 3, kind: input, shape index: {}]
  %s4 = inlined_call_operand.vmem [shape: f32[1,128], index: 4, kind: input, shape index: {}]
  %s5 = inlined_call_operand.vmem [shape: f32[128,128], index: 5, kind: input, shape index: {}]
  %s6 = inlined_call_operand.vmem [shape: f32[1,128], index: 6, kind: input, shape index: {}]
  %s7 = inlined_call_operand.vmem [shape: f32[128,1], index: 7, kind: input, shape index: {}]
  %s8 = inlined_call_operand.<no memory space> [shape: f32[1,1], index: 8, kind: input, shape index: {}]
  %s9 = inlined_call_operand.vmem [shape: f32[8,1], index: 9, kind: output, shape index: {}]
  %s10 = sld [smem:[#allocation0]]
  $region58: #{tpu_custom_call.1} parent=0
    _
  %s12 = ssub.s32 1, %s10
  %s13 = scalar_select 0, %s12, %s10
  %14 = sst [smem:[#allocation2]] %s8
  $region1: #{tpu_custom_call.1} parent=0
    #allocation3 [shape = 'u8[4096]{0}', space=vmem, size = 0x1000, scoped, tag = 'input window, operand 0, single buffered']
    #allocation4 [shape = 's32[1]{0}', space=sflag, size = 0x4, scoped, tag = 'scoped memory for tpu_custom_call.1']
    #allocation5 [shape = 'u8[4096]{0}', space=vmem, size = 0x1000, scoped, tag = 'input window, operand 1, single buffered']
    #allocation6 [shape = 's32[1]{0}', space=sflag, size = 0x4, scoped, tag = 'scoped memory for tpu_custom_call.1']
    #allocation7 [shape = 'u8[4096]{0}', space=vmem, size = 0x1000, scoped, tag = 'input window, operand 3, single buffered']
    %15 = vsyncpa [#allocation4], 0
    %16 = vsyncpa [#allocation6], 0
    // Predicated region
    $region2: #{tpu_custom_call.1} parent=1 // pred_check
      _
    $region3: #{tpu_custom_call.1} parent=1 // pred_check_branch
      %18 = sbr.rel (0) target = $region5
    $region4: #{tpu_custom_call.1} parent=1 // pred_region
      %s20 = ssub.s32 128, 128
      %21 = vsyncadd [#allocation4], %s20
      %s23 = sshll.u32 [#allocation3], 4
      %s24 = int_to_ptr.vmem [resolvable:$true] %s23
      %26 = dma.hbm_to_vmem [thread:$0]  %s0, 128, %s24, [#allocation4]
    $region5: #{tpu_custom_call.1} parent=1 // pred_fallthru
      _
    // Predicated region
    $region6: #{tpu_custom_call.1} parent=1 // pred_check
      _
    $region7: #{tpu_custom_call.1} parent=1 // pred_check_branch
      %28 = sbr.rel (0) target = $region9
    $region8: #{tpu_custom_call.1} parent=1 // pred_region
      %s30 = ssub.s32 128, 128
      %31 = vsyncadd [#allocation6], %s30
      %s33 = sshll.u32 [#allocation5], 4
      %s34 = int_to_ptr.vmem [resolvable:$true] %s33
      %36 = dma.hbm_to_vmem [thread:$0]  %s1, 128, %s34, [#allocation6]
    $region9: #{tpu_custom_call.1} parent=1 // pred_fallthru
      _
    // Predicated region
    $region10: #{tpu_custom_call.1} parent=1 // pred_check
      _
    $region11: #{tpu_custom_call.1} parent=1 // pred_check_branch
      %38 = sbr.rel (0) target = $region13
    $region12: #{tpu_custom_call.1} parent=1 // pred_region
      _
    $region13: #{tpu_custom_call.1} parent=1 // pred_fallthru
      _
    // Predicated region
    $region14: #{tpu_custom_call.1} parent=1 // pred_check
      _
    $region15: #{tpu_custom_call.1} parent=1 // pred_check_branch
      %40 = sbr.rel (0) target = $region17
    $region16: #{tpu_custom_call.1} parent=1 // pred_region
      %s42 = ssub.s32 128, 128
      %43 = vsyncadd [#allocation6], %s42
      %s45 = sshll.u32 [#allocation7], 4
      %s46 = int_to_ptr.vmem [resolvable:$true] %s45
      %48 = dma.hbm_to_vmem [thread:$0]  %s3, 128, %s46, [#allocation6]
    $region17: #{tpu_custom_call.1} parent=1 // pred_fallthru
      _
    // Predicated region
    $region18: #{tpu_custom_call.1} parent=1 // pred_check
      _
    $region19: #{tpu_custom_call.1} parent=1 // pred_check_branch
      %50 = sbr.rel (0) target = $region21
    $region20: #{tpu_custom_call.1} parent=1 // pred_region
      _
    $region21: #{tpu_custom_call.1} parent=1 // pred_fallthru
      _
    // Predicated region
    $region22: #{tpu_custom_call.1} parent=1 // pred_check
      _
    $region23: #{tpu_custom_call.1} parent=1 // pred_check_branch
      %52 = sbr.rel (0) target = $region25
    $region24: #{tpu_custom_call.1} parent=1 // pred_region
      _
    $region25: #{tpu_custom_call.1} parent=1 // pred_fallthru
      _
    // Predicated region
    $region26: #{tpu_custom_call.1} parent=1 // pred_check
      _
    $region27: #{tpu_custom_call.1} parent=1 // pred_check_branch
      %54 = sbr.rel (0) target = $region29
    $region28: #{tpu_custom_call.1} parent=1 // pred_region
      _
    $region29: #{tpu_custom_call.1} parent=1 // pred_fallthru
      _
    // Predicated region
    $region30: #{tpu_custom_call.1} parent=1 // pred_check
      _
    $region31: #{tpu_custom_call.1} parent=1 // pred_check_branch
      %56 = sbr.rel (0) target = $region33
    $region32: #{tpu_custom_call.1} parent=1 // pred_region
      _
    $region33: #{tpu_custom_call.1} parent=1 // pred_fallthru
      _
    // Predicated region
    $region34: #{tpu_custom_call.1} parent=1 // pred_check
      _
    $region35: #{tpu_custom_call.1} parent=1 // pred_check_branch
      %58 = sbr.rel (0) target = $region37
    $region36: #{tpu_custom_call.1} parent=1 // pred_region
      _
    $region37: #{tpu_custom_call.1} parent=1 // pred_fallthru
      _
    // Predicated region
    $region38: #{tpu_custom_call.1} parent=1 // pred_check
      _
    $region39: #{tpu_custom_call.1} parent=1 // pred_check_branch
      %60 = sbr.rel (0) target = $region41
    $region40: #{tpu_custom_call.1} parent=1 // pred_region
      %61 = dma.done [#allocation4], 128
    $region41: #{tpu_custom_call.1} parent=1 // pred_fallthru
      _
    // Predicated region
    $region42: #{tpu_custom_call.1} parent=1 // pred_check
      _
    $region43: #{tpu_custom_call.1} parent=1 // pred_check_branch
      %63 = sbr.rel (0) target = $region45
    $region44: #{tpu_custom_call.1} parent=1 // pred_region
      %64 = dma.done [#allocation6], 128
    $region45: #{tpu_custom_call.1} parent=1 // pred_fallthru
      _
    // Predicated region
    $region46: #{tpu_custom_call.1} parent=1 // pred_check
      _
    $region47: #{tpu_custom_call.1} parent=1 // pred_check_branch
      %66 = sbr.rel (0) target = $region49
    $region48: #{tpu_custom_call.1} parent=1 // pred_region
      %67 = dma.done [#allocation6], 128
    $region49: #{tpu_custom_call.1} parent=1 // pred_fallthru
      _
    %v68 = vld [vmem:[#allocation3] sm:$0xff]
    %v69 = vld [vmem:[%s2] sm:$0xff]
    %v70 = vld [vmem:[%s2 + $0x8] sm:$0xff]
    %v71 = vld [vmem:[#allocation5] sm:$0xff]
    %v72 = vld [vmem:[#allocation7] sm:$0xff]
    %vm73 = vcmask 64512
    %v75 = vsel %vm73, %v71, 0
    %77 = vmatprep.subr.mxu0 0.0
    %78 = vmatpush1.msra.mxu0 %v72
    %79 = vmatprep.subr.mxu0 0.0
    %80 = vmatpush1.msra.mxu0 0.0
    %81 = vmatprep.subr.mxu0 0.0
    %82 = vmatpush1.msra.mxu0 0.0
    %83 = vmatprep.subr.mxu0 0.0
    %84 = vmatpush1.msra.mxu0 0.0
    %85 = vmatprep.subr.mxu0 0.0
    %86 = vmatpush1.msra.mxu0 0.0
    %87 = vmatprep.subr.mxu0 0.0
    %88 = vmatpush1.msra.mxu0 0.0
    %89 = vmatprep.subr.mxu0 0.0
    %90 = vmatpush1.msra.mxu0 0.0
    %91 = vmatprep.subr.mxu0 0.0
    %92 = vmatpush1.msra.mxu0 0.0
    %93 = vmatprep.subr.mxu0 0.0
    %94 = vmatpush1.msra.mxu0 0.0
    %95 = vmatprep.subr.mxu0 0.0
    %96 = vmatpush1.msra.mxu0 0.0
    %97 = vmatprep.subr.mxu0 0.0
    %98 = vmatpush1.msra.mxu0 0.0
    %99 = vmatprep.subr.mxu0 0.0
    %100 = vmatpush1.msra.mxu0 0.0
    %101 = vmatprep.subr.mxu0 0.0
    %102 = vmatpush1.msra.mxu0 0.0
    %103 = vmatprep.subr.mxu0 0.0
    %104 = vmatpush1.msra.mxu0 0.0
    %105 = vmatprep.subr.mxu0 0.0
    %106 = vmatpush1.msra.mxu0 0.0
    %107 = vmatprep.subr.mxu0 0.0
    %108 = vmatpush1.msra.mxu0 0.0
    %109 = vmatprep.subr.mxu0 0.0
    %110 = vmatpush1.msra.mxu0 0.0
    %111 = vmatprep.subr.mxu0 0.0
    %112 = vmatpush1.msra.mxu0 0.0
    %113 = vmatprep.subr.mxu0 0.0
    %114 = vmatpush1.msra.mxu0 0.0
    %115 = vmatprep.subr.mxu0 0.0
    %116 = vmatpush1.msra.mxu0 0.0
    %117 = vmatprep.subr.mxu0 0.0
    %118 = vmatpush1.msra.mxu0 0.0
    %119 = vmatprep.subr.mxu0 0.0
    %120 = vmatpush1.msra.mxu0 0.0
    %121 = vmatprep.subr.mxu0 0.0
    %122 = vmatpush1.msra.mxu0 0.0
    %123 = vmatprep.subr.mxu0 0.0
    %124 = vmatpush1.msra.mxu0 0.0
    %125 = vmatprep.subr.mxu0 0.0
    %126 = vmatpush1.msra.mxu0 0.0
    %127 = vmatprep.subr.mxu0 0.0
    %128 = vmatpush1.msra.mxu0 0.0
    %129 = vmatprep.subr.mxu0 0.0
    %130 = vmatpush1.msra.mxu0 0.0
    %131 = vmatprep.subr.mxu0 0.0
    %132 = vmatpush1.msra.mxu0 0.0
    %133 = vmatprep.subr.mxu0 0.0
    %134 = vmatpush1.msra.mxu0 0.0
    %135 = vmatprep.subr.mxu0 0.0
    %136 = vmatpush1.msra.mxu0 0.0
    %137 = vmatprep.subr.mxu0 0.0
    %138 = vmatpush1.msra.mxu0 0.0
    %139 = vmatprep.subr.mxu0 0.0
    %140 = vmatpush1.msra.mxu0 0.0
    %141 = vmatprep.mubr.f32.mxu0 0.0
    %142 = vmatmul.mubr.f32.gmra.mrb[0].mxu0 %v75
    %v143 = vpop.f32.mrb[0].mxu0
    %v144 = vadd.f32 0.0, %v143
    %v145 = vpop.f32.mrb[0].mxu0
    %146 = vdwg.mxu0
    %vm147 = vcmask 130048
    %v149 = vsel %vm147, %v68, 0
    %151 = vmatprep.subr.mxu0 0.0
    %152 = vmatpush1.msra.mxu0 %v69
    %153 = vmatprep.subr.mxu0 0.0
    %154 = vmatpush1.msra.mxu0 %v70
    %155 = vmatprep.subr.mxu0 0.0
    %156 = vmatpush1.msra.mxu0 0.0
    %157 = vmatprep.subr.mxu0 0.0
    %158 = vmatpush1.msra.mxu0 0.0
    %159 = vmatprep.subr.mxu0 0.0
    %160 = vmatpush1.msra.mxu0 0.0
    %161 = vmatprep.subr.mxu0 0.0
    %162 = vmatpush1.msra.mxu0 0.0
    %163 = vmatprep.subr.mxu0 0.0
    %164 = vmatpush1.msra.mxu0 0.0
    %165 = vmatprep.subr.mxu0 0.0
    %166 = vmatpush1.msra.mxu0 0.0
    %167 = vmatprep.subr.mxu0 0.0
    %168 = vmatpush1.msra.mxu0 0.0
    %169 = vmatprep.subr.mxu0 0.0
    %170 = vmatpush1.msra.mxu0 0.0
    %171 = vmatprep.subr.mxu0 0.0
    %172 = vmatpush1.msra.mxu0 0.0
    %173 = vmatprep.subr.mxu0 0.0
    %174 = vmatpush1.msra.mxu0 0.0
    %175 = vmatprep.subr.mxu0 0.0
    %176 = vmatpush1.msra.mxu0 0.0
    %177 = vmatprep.subr.mxu0 0.0
    %178 = vmatpush1.msra.mxu0 0.0
    %179 = vmatprep.subr.mxu0 0.0
    %180 = vmatpush1.msra.mxu0 0.0
    %181 = vmatprep.subr.mxu0 0.0
    %182 = vmatpush1.msra.mxu0 0.0
    %183 = vmatprep.subr.mxu0 0.0
    %184 = vmatpush1.msra.mxu0 0.0
    %185 = vmatprep.subr.mxu0 0.0
    %186 = vmatpush1.msra.mxu0 0.0
    %187 = vmatprep.subr.mxu0 0.0
    %188 = vmatpush1.msra.mxu0 0.0
    %189 = vmatprep.subr.mxu0 0.0
    %190 = vmatpush1.msra.mxu0 0.0
    %191 = vmatprep.subr.mxu0 0.0
    %192 = vmatpush1.msra.mxu0 0.0
    %193 = vmatprep.subr.mxu0 0.0
    %194 = vmatpush1.msra.mxu0 0.0
    %195 = vmatprep.subr.mxu0 0.0
    %196 = vmatpush1.msra.mxu0 0.0
    %197 = vmatprep.subr.mxu0 0.0
    %198 = vmatpush1.msra.mxu0 0.0
    %199 = vmatprep.subr.mxu0 0.0
    %200 = vmatpush1.msra.mxu0 0.0
    %201 = vmatprep.subr.mxu0 0.0
    %202 = vmatpush1.msra.mxu0 0.0
    %203 = vmatprep.subr.mxu0 0.0
    %204 = vmatpush1.msra.mxu0 0.0
    %205 = vmatprep.subr.mxu0 0.0
    %206 = vmatpush1.msra.mxu0 0.0
    %207 = vmatprep.subr.mxu0 0.0
    %208 = vmatpush1.msra.mxu0 0.0
    %209 = vmatprep.subr.mxu0 0.0
    %210 = vmatpush1.msra.mxu0 0.0
    %211 = vmatprep.subr.mxu0 0.0
    %212 = vmatpush1.msra.mxu0 0.0
    %213 = vmatprep.subr.mxu0 0.0
    %214 = vmatpush1.msra.mxu0 0.0
    %215 = vmatprep.mubr.f32.mxu0 0.0
    %216 = vmatmul.mubr.f32.gmra.mrb[0].mxu0 %v149
    %v217 = vpop.f32.mrb[0].mxu0
    %v218 = vadd.f32 %v144, %v217
    %v219 = vpop.f32.mrb[0].mxu0
    %220 = vdwg.mxu0
    %v221 = vld [vmem:[%s4] sm:$0x1]
    %v223 = vlaneseq
    %v224 = vshrl.u32 %v223, 7
    %v225 = vsub.s32 0, %v224
    %v226 = vrot.slane %v221, %v225
    %v228 = vadd.f32 %v218, %v226
    %v229 = vmax.f32 %v228, 0.0
    %v230 = vld [vmem:[%s5] sm:$0xff]
    %v231 = vld [vmem:[%s5 + $0x8] sm:$0xff]
    %v232 = vld [vmem:[%s5 + $0x10] sm:$0xff]
    %v233 = vld [vmem:[%s5 + $0x18] sm:$0xff]
    %v234 = vld [vmem:[%s5 + $0x20] sm:$0xff]
    %v235 = vld [vmem:[%s5 + $0x28] sm:$0xff]
    %v236 = vld [vmem:[%s5 + $0x30] sm:$0xff]
    %v237 = vld [vmem:[%s5 + $0x38] sm:$0xff]
    %v238 = vld [vmem:[%s5 + $0x40] sm:$0xff]
    %v239 = vld [vmem:[%s5 + $0x48] sm:$0xff]
    %v240 = vld [vmem:[%s5 + $0x50] sm:$0xff]
    %v241 = vld [vmem:[%s5 + $0x58] sm:$0xff]
    %v242 = vld [vmem:[%s5 + $0x60] sm:$0xff]
    %v243 = vld [vmem:[%s5 + $0x68] sm:$0xff]
    %v244 = vld [vmem:[%s5 + $0x70] sm:$0xff]
    %v245 = vld [vmem:[%s5 + $0x78] sm:$0xff]
    %v246 = vld [vmem:[%s6] sm:$0x1]
    %v248 = vlaneseq
    %v249 = vshrl.u32 %v248, 7
    %v250 = vsub.s32 0, %v249
    %v251 = vrot.slane %v246, %v250
    %253 = vmatprep.subr.mxu0 0.0
    %254 = vmatpush1.msra.mxu0 %v230
    %255 = vmatprep.subr.mxu0 0.0
    %256 = vmatpush1.msra.mxu0 %v231
    %257 = vmatprep.subr.mxu0 0.0
    %258 = vmatpush1.msra.mxu0 %v232
    %259 = vmatprep.subr.mxu0 0.0
    %260 = vmatpush1.msra.mxu0 %v233
    %261 = vmatprep.subr.mxu0 0.0
    %262 = vmatpush1.msra.mxu0 %v234
    %263 = vmatprep.subr.mxu0 0.0
    %264 = vmatpush1.msra.mxu0 %v235
    %265 = vmatprep.subr.mxu0 0.0
    %266 = vmatpush1.msra.mxu0 %v236
    %267 = vmatprep.subr.mxu0 0.0
    %268 = vmatpush1.msra.mxu0 %v237
    %269 = vmatprep.subr.mxu0 0.0
    %270 = vmatpush1.msra.mxu0 %v238
    %271 = vmatprep.subr.mxu0 0.0
    %272 = vmatpush1.msra.mxu0 %v239
    %273 = vmatprep.subr.mxu0 0.0
    %274 = vmatpush1.msra.mxu0 %v240
    %275 = vmatprep.subr.mxu0 0.0
    %276 = vmatpush1.msra.mxu0 %v241
    %277 = vmatprep.subr.mxu0 0.0
    %278 = vmatpush1.msra.mxu0 %v242
    %279 = vmatprep.subr.mxu0 0.0
    %280 = vmatpush1.msra.mxu0 %v243
    %281 = vmatprep.subr.mxu0 0.0
    %282 = vmatpush1.msra.mxu0 %v244
    %283 = vmatprep.subr.mxu0 0.0
    %284 = vmatpush1.msra.mxu0 %v245
    %285 = vmatprep.subr.mxu0 0.0
    %286 = vmatpush1.msra.mxu0 0.0
    %287 = vmatprep.subr.mxu0 0.0
    %288 = vmatpush1.msra.mxu0 0.0
    %289 = vmatprep.subr.mxu0 0.0
    %290 = vmatpush1.msra.mxu0 0.0
    %291 = vmatprep.subr.mxu0 0.0
    %292 = vmatpush1.msra.mxu0 0.0
    %293 = vmatprep.subr.mxu0 0.0
    %294 = vmatpush1.msra.mxu0 0.0
    %295 = vmatprep.subr.mxu0 0.0
    %296 = vmatpush1.msra.mxu0 0.0
    %297 = vmatprep.subr.mxu0 0.0
    %298 = vmatpush1.msra.mxu0 0.0
    %299 = vmatprep.subr.mxu0 0.0
    %300 = vmatpush1.msra.mxu0 0.0
    %301 = vmatprep.subr.mxu0 0.0
    %302 = vmatpush1.msra.mxu0 0.0
    %303 = vmatprep.subr.mxu0 0.0
    %304 = vmatpush1.msra.mxu0 0.0
    %305 = vmatprep.subr.mxu0 0.0
    %306 = vmatpush1.msra.mxu0 0.0
    %307 = vmatprep.subr.mxu0 0.0
    %308 = vmatpush1.msra.mxu0 0.0
    %309 = vmatprep.subr.mxu0 0.0
    %310 = vmatpush1.msra.mxu0 0.0
    %311 = vmatprep.subr.mxu0 0.0
    %312 = vmatpush1.msra.mxu0 0.0
    %313 = vmatprep.subr.mxu0 0.0
    %314 = vmatpush1.msra.mxu0 0.0
    %315 = vmatprep.subr.mxu0 0.0
    %316 = vmatpush1.msra.mxu0 0.0
    %317 = vmatprep.mubr.f32.mxu0 0.0
    %318 = vmatmul.mubr.f32.gmra.mrb[0].mxu0 %v229
    %v319 = vpop.f32.mrb[0].mxu0
    %v320 = vadd.f32 %v251, %v319
    %v321 = vpop.f32.mrb[0].mxu0
    %322 = vdwg.mxu0
    %v323 = vmax.f32 %v320, 0.0
    %v324 = vld [vmem:[%s7] sm:$0xff]
    %v325 = vld [vmem:[%s7 + $0x8] sm:$0xff]
    %v326 = vld [vmem:[%s7 + $0x10] sm:$0xff]
    %v327 = vld [vmem:[%s7 + $0x18] sm:$0xff]
    %v328 = vld [vmem:[%s7 + $0x20] sm:$0xff]
    %v329 = vld [vmem:[%s7 + $0x28] sm:$0xff]
    %v330 = vld [vmem:[%s7 + $0x30] sm:$0xff]
    %v331 = vld [vmem:[%s7 + $0x38] sm:$0xff]
    %v332 = vld [vmem:[%s7 + $0x40] sm:$0xff]
    %v333 = vld [vmem:[%s7 + $0x48] sm:$0xff]
    %v334 = vld [vmem:[%s7 + $0x50] sm:$0xff]
    %v335 = vld [vmem:[%s7 + $0x58] sm:$0xff]
    %v336 = vld [vmem:[%s7 + $0x60] sm:$0xff]
    %v337 = vld [vmem:[%s7 + $0x68] sm:$0xff]
    %v338 = vld [vmem:[%s7 + $0x70] sm:$0xff]
    %v339 = vld [vmem:[%s7 + $0x78] sm:$0xff]
    %s340 = sld [smem:[#allocation2]]
    %v341 = vstv %s340
    %342 = vmatprep.subr.mxu0 0.0
    %343 = vmatpush1.msra.mxu0 %v324
    %344 = vmatprep.subr.mxu0 0.0
    %345 = vmatpush1.msra.mxu0 %v325
    %346 = vmatprep.subr.mxu0 0.0
    %347 = vmatpush1.msra.mxu0 %v326
    %348 = vmatprep.subr.mxu0 0.0
    %349 = vmatpush1.msra.mxu0 %v327
    %350 = vmatprep.subr.mxu0 0.0
    %351 = vmatpush1.msra.mxu0 %v328
    %352 = vmatprep.subr.mxu0 0.0
    %353 = vmatpush1.msra.mxu0 %v329
    %354 = vmatprep.subr.mxu0 0.0
    %355 = vmatpush1.msra.mxu0 %v330
    %356 = vmatprep.subr.mxu0 0.0
    %357 = vmatpush1.msra.mxu0 %v331
    %358 = vmatprep.subr.mxu0 0.0
    %359 = vmatpush1.msra.mxu0 %v332
    %360 = vmatprep.subr.mxu0 0.0
    %361 = vmatpush1.msra.mxu0 %v333
    %362 = vmatprep.subr.mxu0 0.0
    %363 = vmatpush1.msra.mxu0 %v334
    %364 = vmatprep.subr.mxu0 0.0
    %365 = vmatpush1.msra.mxu0 %v335
    %366 = vmatprep.subr.mxu0 0.0
    %367 = vmatpush1.msra.mxu0 %v336
    %368 = vmatprep.subr.mxu0 0.0
    %369 = vmatpush1.msra.mxu0 %v337
    %370 = vmatprep.subr.mxu0 0.0
    %371 = vmatpush1.msra.mxu0 %v338
    %372 = vmatprep.subr.mxu0 0.0
    %373 = vmatpush1.msra.mxu0 %v339
    %374 = vmatprep.subr.mxu0 0.0
    %375 = vmatpush1.msra.mxu0 0.0
    %376 = vmatprep.subr.mxu0 0.0
    %377 = vmatpush1.msra.mxu0 0.0
    %378 = vmatprep.subr.mxu0 0.0
    %379 = vmatpush1.msra.mxu0 0.0
    %380 = vmatprep.subr.mxu0 0.0
    %381 = vmatpush1.msra.mxu0 0.0
    %382 = vmatprep.subr.mxu0 0.0
    %383 = vmatpush1.msra.mxu0 0.0
    %384 = vmatprep.subr.mxu0 0.0
    %385 = vmatpush1.msra.mxu0 0.0
    %386 = vmatprep.subr.mxu0 0.0
    %387 = vmatpush1.msra.mxu0 0.0
    %388 = vmatprep.subr.mxu0 0.0
    %389 = vmatpush1.msra.mxu0 0.0
    %390 = vmatprep.subr.mxu0 0.0
    %391 = vmatpush1.msra.mxu0 0.0
    %392 = vmatprep.subr.mxu0 0.0
    %393 = vmatpush1.msra.mxu0 0.0
    %394 = vmatprep.subr.mxu0 0.0
    %395 = vmatpush1.msra.mxu0 0.0
    %396 = vmatprep.subr.mxu0 0.0
    %397 = vmatpush1.msra.mxu0 0.0
    %398 = vmatprep.subr.mxu0 0.0
    %399 = vmatpush1.msra.mxu0 0.0
    %400 = vmatprep.subr.mxu0 0.0
    %401 = vmatpush1.msra.mxu0 0.0
    %402 = vmatprep.subr.mxu0 0.0
    %403 = vmatpush1.msra.mxu0 0.0
    %404 = vmatprep.subr.mxu0 0.0
    %405 = vmatpush1.msra.mxu0 0.0
    %406 = vmatprep.mubr.f32.mxu0 0.0
    %407 = vmatmul.mubr.f32.gmra.mrb[0].mxu0 %v323
    %v408 = vpop.f32.mrb[0].mxu0
    %v409 = vadd.f32 %v341, %v408
    %v410 = vpop.f32.mrb[0].mxu0
    %411 = vdwg.mxu0
    %vm412 = vcmask 7168
    %413 = vst.msk [vmem:[%s9] sm:$0xff] %vm412, %v409
    // Predicated region
    $region50: #{tpu_custom_call.1} parent=1 // pred_check
      _
    $region51: #{tpu_custom_call.1} parent=1 // pred_check_branch
      %415 = sbr.rel (0) target = $region53
    $region52: #{tpu_custom_call.1} parent=1 // pred_region
      _
    $region53: #{tpu_custom_call.1} parent=1 // pred_fallthru
      _
    // Predicated region
    $region54: #{tpu_custom_call.1} parent=1 // pred_check
      _
    $region55: #{tpu_custom_call.1} parent=1 // pred_check_branch
      %417 = sbr.rel (0) target = $region57
    $region56: #{tpu_custom_call.1} parent=1 // pred_region
      _
    $region57: #{tpu_custom_call.1} parent=1 // pred_fallthru
      _
    %418 = vsyncpa [#allocation4], 1
    %419 = vsyncpa [#allocation6], 1

</llo_original>
